<compile_context>
chip_gen: v6e
topology: v6e:2x2x1
jax: 0.10.0
libtpu: 0.0.40
codegen_flags: <defaults>
</compile_context>

<pallas_src>
import numpy as np
import jax
import jax.numpy as jnp
from jax import lax
from jax.experimental import pallas as pl
from jax.experimental.pallas import tpu as pltpu


def _rup(a, m):
    return ((a + m - 1) // m) * m


# ----------------------------------------------------------------------------
# Kernel 1: bilinear resize (normalize_outputs)
# ----------------------------------------------------------------------------
def _bilinear_matrix(out_size: int, in_size: int) -> np.ndarray:
    """Row-stochastic bilinear interpolation matrix (half-pixel centers)."""
    scale = in_size / out_size
    i = np.arange(out_size, dtype=np.float64)
    src = np.clip((i + 0.5) * scale - 0.5, 0.0, in_size - 1)
    i0 = np.floor(src).astype(np.int64)
    i1 = np.minimum(i0 + 1, in_size - 1)
    w1 = src - i0
    w0 = 1.0 - w1
    m = np.zeros((out_size, in_size), dtype=np.float32)
    m[np.arange(out_size), i0] += w0.astype(np.float32)
    m[np.arange(out_size), i1] += w1.astype(np.float32)
    return m


def _pick_bp(nc, H, W, Ho, Wo, budget_bytes=20 * 1024 * 1024):
    # Keep >=4 grid steps when nc allows (2 TCs x 2 pipeline stages on v7x),
    # block sublane dims multiples of 8, and the per-step VMEM footprint
    # (double-buffered in/out planes + resident interp matrices + the fused
    # W-contraction intermediate) under budget.
    cap = max(1, nc // 4)
    for bp in range(min(cap, nc), 0, -1):
        if nc % bp:
            continue
        if (bp * H) % 8 != 0 and bp != nc:
            continue
        if (bp * Ho) % 8 != 0 and bp != nc:
            continue
        fp = 4 * (2 * bp * H * W + 2 * bp * Ho * Wo + bp * H * Wo
                  + 2 * Ho * H + 2 * W * Wo)
        if fp <= budget_bytes:
            return bp
    # Last resort: full-extent block (always a legal BlockSpec).
    return nc if ((H % 8) or (Ho % 8)) else 1


def _resize_kernel(x_ref, rh_ref, rwT_ref, o_ref, t_ref):
    # x_ref : (bp*H, W)   rh_ref : (Ho, H)   rwT_ref : (W, Wo)
    # o_ref : (bp*Ho, Wo) t_ref  : (bp*H, Wo) f32 scratch
    Ho, H = rh_ref.shape
    bp = x_ref.shape[0] // H
    # W-contraction fused across every plane of this step: one MXU matmul.
    t_ref[...] = jnp.dot(x_ref[...], rwT_ref[...],
                         preferred_element_type=jnp.float32)
    rh = rh_ref[...]
    for p in range(bp):  # H-contraction per plane (short static unroll)
        o_ref[p * Ho:(p + 1) * Ho, :] = jnp.dot(
            rh, t_ref[p * H:(p + 1) * H, :],
            preferred_element_type=jnp.float32).astype(o_ref.dtype)


def bilinear_resize_nchw(x: jax.Array, out_hw) -> jax.Array:
    """normalize_outputs(): resize NCHW tensor to out_hw with bilinear interp."""
    N, C, H, W = x.shape
    Ho, Wo = out_hw
    if (H, W) == (Ho, Wo):
        return x
    rh = jnp.asarray(_bilinear_matrix(Ho, H))         # (Ho, H)
    rwT = jnp.asarray(_bilinear_matrix(Wo, W)).T      # (W, Wo)
    nc = N * C
    bp = _pick_bp(nc, H, W, Ho, Wo)
    x_flat = x.reshape(nc * H, W)                     # free reshape (no transpose)

    # NOTE: for Wo < 128 the output stores are lane-masked; folding planes into
    # the lane axis would fix that but only matters for tiny target widths.
    out = pl.pallas_call(
        _resize_kernel,
        out_shape=jax.ShapeDtypeStruct((nc * Ho, Wo), x.dtype),
        grid=(nc // bp,),
        in_specs=[
            pl.BlockSpec((bp * H, W), lambda i: (i, 0)),
            pl.BlockSpec((Ho, H), lambda i: (0, 0)),   # resident
            pl.BlockSpec((W, Wo), lambda i: (0, 0)),   # resident
        ],
        out_specs=pl.BlockSpec((bp * Ho, Wo), lambda i: (i, 0)),
        scratch_shapes=[pltpu.VMEM((bp * H, Wo), jnp.float32)],
        compiler_params=pltpu.CompilerParams(
            dimension_semantics=("parallel",),
            vmem_limit_bytes=32 * 1024 * 1024),
    )(x_flat, rh, rwT)
    return out.reshape(N, C, Ho, Wo)


# ----------------------------------------------------------------------------
# Kernel 2: ResNet conv1 stem (7x7 / stride 2 / pad 3) with in-kernel im2col
# ----------------------------------------------------------------------------
def conv_stem_nchw(x, weight, bias, mean, std):
    """x: (N, 3, H, W) f32, weight: (64, 3, 7, 7), bias: (64,), mean/std: (3,).

    Returns conv1((x - mean) / std) as (N, 64, Ho, Wo) bf16.
    """
    N, Cin, H, W = x.shape
    Cout, wc, kh, kw = weight.shape
    assert Cin == 3 and wc == 3 and (kh, kw) == (7, 7)
    stride, pad = 2, 3
    Ho = (H + 2 * pad - kh) // stride + 1
    Wo = (W + 2 * pad - kw) // stride + 1

    TRo = 8                              # output rows per grid step
    Wo_p = _rup(Wo, 16)                  # so TRo*Wo_p is a multiple of 128
    Ho_p = _rup(Ho, TRo)
    Hh, Wh = Ho_p + 3, Wo_p + 3          # half-resolution (phase) extents
    K = Cin * kh * kw                    # 147
    KP = _rup(K + 1, 16)                 # 160: row K = ones (bias), rest zero
    cols = TRo * Wo_p

    # --- host prep (cheap, fuses into ~2 XLA passes over the image) ---------
    # ph[n, yh, (yb*2 + xb)*3 + c, xh] = padded(x - mean)[n, c, 2*yh+yb, 2*xh+xb]
    xc = (x - mean.reshape(1, 3, 1, 1)).astype(jnp.bfloat16)
    xp = jnp.zeros((N, Cin, 2 * Hh, 2 * Wh), jnp.bfloat16)
    xp = xp.at[:, :, pad:pad + H, pad:pad + W].set(xc)
    ph = xp.reshape(N, Cin, Hh, 2, Wh, 2).transpose(0, 2, 3, 5, 1, 4)
    ph = ph.reshape(N, Hh, 4 * Cin, Wh)

    # Weights: fold 1/std (exact under zero padding) and bias (ones patch row).
    # K order is (i, j, c) to match the in-kernel patch assembly below.
    # NOTE: bf16 operands with f32 accumulation (approximation is flagged).
    w_k = (weight / std.reshape(1, 3, 1, 1)).transpose(0, 2, 3, 1).reshape(Cout, K)
    w_k = jnp.concatenate(
        [w_k, bias.reshape(Cout, 1), jnp.zeros((Cout, KP - K - 1), w_k.dtype)],
        axis=1).astype(jnp.bfloat16)

    def kernel(ph_ref, w_ref, o_ref, patch_ref):
        rb = pl.program_id(1) * TRo
        # Constant tail of the patch tile (rewritten every step: no cross-step
        # or per-core scratch-initialization hazard).
        patch_ref[K:KP, :] = jnp.zeros((KP - K, cols), jnp.bfloat16)
        patch_ref[K:K + 1, :] = jnp.ones((1, cols), jnp.bfloat16)
        # In-kernel im2col: 49 taps x TRo output rows; each copy is a
        # contiguous (3, Wo_p) slab of the phase image (no strided loads).
        for r in range(TRo):
            c0 = r * Wo_p
            for i in range(kh):
                a, yb = i // 2, i % 2
                for j in range(kw):
                    b, xb = j // 2, j % 2
                    k0 = (i * kw + j) * Cin
                    pc = (yb * 2 + xb) * Cin
                    patch_ref[k0:k0 + Cin, c0:c0 + Wo_p] = (
                        ph_ref[0, rb + r + a, pc:pc + Cin, b:b + Wo_p])
        # One bf16 MXU matmul per step; lane-dense (64, TRo*Wo_p) bf16 store.
        acc = jnp.dot(w_ref[...], patch_ref[...],
                      preferred_element_type=jnp.float32)
        o_ref[0] = acc.astype(o_ref.dtype)

    out = pl.pallas_call(
        kernel,
        out_shape=jax.ShapeDtypeStruct((N, Cout, Ho_p * Wo_p), jnp.bfloat16),
        grid=(N, Ho_p // TRo),
        in_specs=[
            # Whole phase image resident per n (re-DMAed only when n changes).
            pl.BlockSpec((1, Hh, 4 * Cin, Wh), lambda n, t: (n, 0, 0, 0)),
            pl.BlockSpec((Cout, KP), lambda n, t: (0, 0)),        # resident
        ],
        out_specs=pl.BlockSpec((1, Cout, cols), lambda n, t: (n, 0, t)),
        scratch_shapes=[pltpu.VMEM((KP, cols), jnp.bfloat16)],
        compiler_params=pltpu.CompilerParams(
            dimension_semantics=("parallel", "arbitrary"),
            vmem_limit_bytes=32 * 1024 * 1024),
    )(ph, w_k)

    out = out.reshape(N, Cout, Ho_p, Wo_p)
    if (Ho_p, Wo_p) != (Ho, Wo):
        out = out[:, :, :Ho, :Wo]
    return out


# ----------------------------------------------------------------------------
# FCOSLoss forward (the translatable portion)
# ----------------------------------------------------------------------------
def fcos_loss_forward(outputs, imgs, conv1_w, conv1_b):
    # --- normalize_outputs(outputs, imgs) ---
    batch_size = imgs.shape[0]
    outputs = bilinear_resize_nchw(outputs, imgs.shape[-2:])

    # --- cat((outputs, imgs), dim=0) fed to the detector, then input
    #     normalization + ResNet conv1 (Pallas, in-kernel im2col) ---
    cat_inputs = jnp.concatenate([outputs, imgs], axis=0)          # (2B, 3, H, W)
    mean = jnp.array([0.485, 0.456, 0.406], jnp.float32)
    std = jnp.array([0.229, 0.224, 0.225], jnp.float32)
    stem_feats = conv_stem_nchw(cat_inputs, conv1_w, conv1_b, mean, std)

    # TODO(synk): remaining ResNet-50-FPN stages, FCOS heads, NMS/postprocess,
    #             training-mode loss dict + sum, DDP, and f1_score require the
    #             pretrained detector and are intentionally not reproduced.
    return batch_size, outputs, cat_inputs, stem_feats


if __name__ == "__main__":
    key = jax.random.PRNGKey(0)
    k1, k2, k3 = jax.random.split(key, 3)

    # Small shapes: decoder output 2x3x16x16, reference images 2x3x32x32
    # (up-sampling path, where Resize(antialias=True) == plain bilinear).
    outputs = jax.random.uniform(k1, (2, 3, 16, 16), dtype=jnp.float32)
    imgs = jax.random.uniform(k2, (2, 3, 32, 32), dtype=jnp.float32)

    # Deterministic synthetic conv1 parameters (ResNet conv1: 64x3x7x7).
    conv1_w = 0.05 * jax.random.normal(k3, (64, 3, 7, 7), dtype=jnp.float32)
    conv1_b = jnp.zeros((64,), dtype=jnp.float32)

    bsz, resized, cat_inputs, stem = fcos_loss_forward(
        outputs, imgs, conv1_w, conv1_b)
    jax.block_until_ready((resized, cat_inputs, stem))

    assert bsz == 2
    assert resized.shape == (2, 3, 32, 32)
    assert cat_inputs.shape == (4, 3, 32, 32)
    assert stem.shape == (4, 64, 16, 16)

    # Sanity check 1: Pallas resize (f32) vs jax.image bilinear.
    ref_resize = jax.image.resize(outputs, (2, 3, 32, 32), method="bilinear")
    np.testing.assert_allclose(np.asarray(resized), np.asarray(ref_resize),
                               rtol=1e-4, atol=1e-4)

    # Sanity check 2: Pallas bf16 conv stem vs XLA conv on identically
    # bf16-rounded operands (difference: accumulation order + bf16 output).
    mean = jnp.array([0.485, 0.456, 0.406], jnp.float32).reshape(1, 3, 1, 1)
    std = jnp.array([0.229, 0.224, 0.225], jnp.float32).reshape(1, 3, 1, 1)
    lhs = (cat_inputs - mean).astype(jnp.bfloat16).astype(jnp.float32)
    rhs = (conv1_w / std).astype(jnp.bfloat16).astype(jnp.float32)
    ref_stem = lax.conv_general_dilated(
        lhs, rhs, window_strides=(2, 2), padding=((3, 3), (3, 3)),
        dimension_numbers=("NCHW", "OIHW", "NCHW")) + conv1_b.reshape(1, -1, 1, 1)
    np.testing.assert_allclose(np.asarray(stem).astype(np.float32),
                               np.asarray(ref_stem), rtol=2e-2, atol=2e-2)

    print("KERNEL_OK")
</pallas_src>

<mosaic_0001>
module attributes {stable_mosaic.version = 11 : i64} {
  func.func @_resize_kernel(%arg0: i32, %arg1: memref<16x16xf32, #tpu.memory_space<vmem>>, %arg2: memref<32x16xf32, #tpu.memory_space<vmem>>, %arg3: memref<16x32xf32, #tpu.memory_space<vmem>>, %arg4: memref<32x32xf32, #tpu.memory_space<vmem>>, %arg5: memref<16x32xf32, #tpu.memory_space<vmem>>) attributes {dimension_semantics = [#tpu.dimension_semantics<parallel>], iteration_bounds = array<i64: 6>, scalar_prefetch = 0 : i64, scratch_operands = 1 : i64, tpu.core_type = #tpu.core_type<tc>, window_params = [{transform_indices = @transform_0, window_bounds = array<i64: 16, 16>}, {pipeline_mode = #tpu.pipeline_mode<synchronous>, transform_indices = @transform_1, window_bounds = array<i64: 32, 16>}, {pipeline_mode = #tpu.pipeline_mode<synchronous>, transform_indices = @transform_2, window_bounds = array<i64: 16, 32>}, {transform_indices = @transform_3, window_bounds = array<i64: 32, 32>}]} {
    %c0 = arith.constant 0 : index
    %c0_0 = arith.constant 0 : index
    %0 = vector.load %arg1[%c0, %c0_0] : memref<16x16xf32, #tpu.memory_space<vmem>>, vector<16x16xf32>
    %c0_1 = arith.constant 0 : index
    %c0_2 = arith.constant 0 : index
    %1 = vector.load %arg3[%c0_1, %c0_2] : memref<16x32xf32, #tpu.memory_space<vmem>>, vector<16x32xf32>
    %cst = arith.constant dense<0.000000e+00> : vector<16x32xf32>
    %2 = tpu.matmul %0, %1, %cst {dimension_numbers = #tpu.dot_dimension_numbers<[1], [0], [0], [1], [0, 0, 1, 1], [], []>} : vector<16x16xf32>, vector<16x32xf32>, vector<16x32xf32> -> vector<16x32xf32>
    %c0_3 = arith.constant 0 : index
    %c0_4 = arith.constant 0 : index
    %3 = vector.load %arg5[%c0_3, %c0_4] : memref<16x32xf32, #tpu.memory_space<vmem>>, vector<16x32xf32>
    tpu.vector_store %arg5[%c0_3, %c0_4], %2 {strides = array<i32>} : memref<16x32xf32, #tpu.memory_space<vmem>>, vector<16x32xf32>,
    %c0_5 = arith.constant 0 : index
    %c0_6 = arith.constant 0 : index
    %4 = vector.load %arg2[%c0_5, %c0_6] : memref<32x16xf32, #tpu.memory_space<vmem>>, vector<32x16xf32>
    %c0_7 = arith.constant 0 : index
    %c0_8 = arith.constant 0 : index
    %5 = vector.load %arg5[%c0_7, %c0_8] : memref<16x32xf32, #tpu.memory_space<vmem>>, vector<16x32xf32>
    %cst_9 = arith.constant dense<0.000000e+00> : vector<32x32xf32>
    %6 = tpu.matmul %4, %5, %cst_9 {dimension_numbers = #tpu.dot_dimension_numbers<[1], [0], [0], [1], [0, 0, 1, 1], [], []>} : vector<32x16xf32>, vector<16x32xf32>, vector<32x32xf32> -> vector<32x32xf32>
    %c0_10 = arith.constant 0 : index
    %c0_11 = arith.constant 0 : index
    %7 = vector.load %arg4[%c0_10, %c0_11] : memref<32x32xf32, #tpu.memory_space<vmem>>, vector<32x32xf32>
    tpu.vector_store %arg4[%c0_10, %c0_11], %6 {strides = array<i32>} : memref<32x32xf32, #tpu.memory_space<vmem>>, vector<32x32xf32>,
    return
  }
  func.func @transform_0(%arg0: i32) -> (i32, i32) {
    %c0_i32 = arith.constant 0 : i32
    %c0_i32_0 = arith.constant 0 : i32
    return %arg0, %c0_i32 : i32, i32
  }
  func.func @transform_1(%arg0: i32) -> (i32, i32) {
    %c0_i32 = arith.constant 0 : i32
    %c0_i32_0 = arith.constant 0 : i32
    %c0_i32_1 = arith.constant 0 : i32
    return %c0_i32, %c0_i32_0 : i32, i32
  }
  func.func @transform_2(%arg0: i32) -> (i32, i32) {
    %c0_i32 = arith.constant 0 : i32
    %c0_i32_0 = arith.constant 0 : i32
    %c0_i32_1 = arith.constant 0 : i32
    return %c0_i32, %c0_i32_0 : i32, i32
  }
  func.func @transform_3(%arg0: i32) -> (i32, i32) {
    %c0_i32 = arith.constant 0 : i32
    %c0_i32_0 = arith.constant 0 : i32
    return %arg0, %c0_i32 : i32, i32
  }
}

</mosaic_0001>

<llo_original>
// kernel: tpu_custom_call.1
$region0: #{tpu_custom_call.1}
  #allocation0 [shape = 'u32[]', space=smem, size = 0x4, offset = 0x4, fixed_abs, tag = 'smem constant byte address 0x4 - core index']
  #allocation1 [shape = 'u32[144,128]{1,0:T(1,128)}', space=vmem, size = 0x12000, scoped, tag = 'internal scratch']
  #allocation2 [shape = 'f32[16,32]{1,0:T(8,128)}', space=vmem, size = 0x2000, scoped, tag = 'scratch operand']
  %s0 = inlined_call_operand.vmem [shape: f32[96,16], index: 0, kind: input, shape index: {}]
  %s1 = inlined_call_operand.vmem [shape: f32[32,16], index: 1, kind: input, shape index: {}]
  %s2 = inlined_call_operand.vmem [shape: f32[16,32], index: 2, kind: input, shape index: {}]
  %s3 = inlined_call_operand.vmem [shape: f32[192,32], index: 3, kind: output, shape index: {}]
  %s4 = sld [smem:[#allocation0]]
  $region45: #{tpu_custom_call.1} parent=0
    _
  %s6 = ssub.s32 1, %s4
  %s7 = scalar_select 0, %s6, %s4
  loop: start=0, step=1, limit=8
  $region2: #{tpu_custom_call.1} parent=0 // loop_pre_header
    _
  $region3: #{tpu_custom_call.1} parent=0 // loop_header
    %s9 = sphi 0, %s13
    %p10 = scmp.ge.s32.totalorder %s9, 8
    %s19 = sphi 0, %s21
    %s22 = sphi 0, %s19
    %s23 = sphi 0, %s22
    %s39 = sphi 0, %s23
    %s43 = sphi 0, %s43
    %s45 = sphi 0, %s43
    %s46 = sphi 0, %s45
    %s60 = sphi 0, %s46
    %s64 = sphi 0, %s64
    %s66 = sphi 0, %s64
    %s67 = sphi 0, %s66
    %s81 = sphi 0, %s67
    %s87 = sphi 0, %s89
    %s90 = sphi 0, %s87
    %s91 = sphi 0, %s90
    %s107 = sphi 0, %s91
  $region4: #{tpu_custom_call.1} parent=0 // loop_header_branch
    %12 = sbr.rel (%p10) target = $region8
  $region5: #{tpu_custom_call.1} parent=0 // loop_body
    %s14 = ssub.s32 %s9, 1
    %s15 = ssub.s32 %s9, 2
    %s16 = sadd.s32 %s9, 1
    %s17 = ssub.s32 %s9, %s16
    %p18 = scmp.eq.s32.totalorder %s17, 0
    %s20 = sadd.s32 %s19, 1
    %s21 = scalar_select %p18, %s19, %s20
    %p24 = pneg %p18
    %p25 = scmp.eq.s32.totalorder %s9, 5
    %p26 = por %p24, %p25
    %p27 = scmp.ne.s32.totalorder %s19, %s22
    %p28 = scmp.eq.s32.totalorder %s9, 0
    %p29 = por %p27, %p28
    %p30 = scmp.ne.s32.totalorder %s19, %s22
    %p31 = scmp.eq.s32.totalorder %s14, 5
    %p32 = por %p30, %p31
    %p33 = scmp.ne.s32.totalorder %s22, %s23
    %p34 = scmp.eq.s32.totalorder %s14, 0
    %p35 = por %p33, %p34
    %p36 = scmp.ne.s32.totalorder %s22, %s23
    %p37 = scmp.eq.s32.totalorder %s15, 5
    %p38 = por %p36, %p37
    %p40 = scmp.ne.s32.totalorder %s23, %s39
    %p41 = scmp.eq.s32.totalorder %s15, 0
    %p42 = por %p40, %p41
    %s44 = sadd.s32 %s43, 1
    %p47 = scmp.eq.s32.totalorder %s9, 5
    %p48 = scmp.ne.s32.totalorder %s43, %s45
    %p49 = scmp.eq.s32.totalorder %s9, 0
    %p50 = por %p48, %p49
    %p51 = scmp.ne.s32.totalorder %s43, %s45
    %p52 = scmp.eq.s32.totalorder %s14, 5
    %p53 = por %p51, %p52
    %p54 = scmp.ne.s32.totalorder %s45, %s46
    %p55 = scmp.eq.s32.totalorder %s14, 0
    %p56 = por %p54, %p55
    %p57 = scmp.ne.s32.totalorder %s45, %s46
    %p58 = scmp.eq.s32.totalorder %s15, 5
    %p59 = por %p57, %p58
    %p61 = scmp.ne.s32.totalorder %s46, %s60
    %p62 = scmp.eq.s32.totalorder %s15, 0
    %p63 = por %p61, %p62
    %s65 = sadd.s32 %s64, 1
    %p68 = scmp.eq.s32.totalorder %s9, 5
    %p69 = scmp.ne.s32.totalorder %s64, %s66
    %p70 = scmp.eq.s32.totalorder %s9, 0
    %p71 = por %p69, %p70
    %p72 = scmp.ne.s32.totalorder %s64, %s66
    %p73 = scmp.eq.s32.totalorder %s14, 5
    %p74 = por %p72, %p73
    %p75 = scmp.ne.s32.totalorder %s66, %s67
    %p76 = scmp.eq.s32.totalorder %s14, 0
    %p77 = por %p75, %p76
    %p78 = scmp.ne.s32.totalorder %s66, %s67
    %p79 = scmp.eq.s32.totalorder %s15, 5
    %p80 = por %p78, %p79
    %p82 = scmp.ne.s32.totalorder %s67, %s81
    %p83 = scmp.eq.s32.totalorder %s15, 0
    %p84 = por %p82, %p83
    %s85 = ssub.s32 %s9, %s16
    %p86 = scmp.eq.s32.totalorder %s85, 0
    %s88 = sadd.s32 %s87, 1
    %s89 = scalar_select %p86, %s87, %s88
    %p92 = pneg %p86
    %p93 = scmp.eq.s32.totalorder %s9, 5
    %p94 = por %p92, %p93
    %p95 = scmp.ne.s32.totalorder %s87, %s90
    %p96 = scmp.eq.s32.totalorder %s9, 0
    %p97 = por %p95, %p96
    %p98 = scmp.ne.s32.totalorder %s87, %s90
    %p99 = scmp.eq.s32.totalorder %s14, 5
    %p100 = por %p98, %p99
    %p101 = scmp.ne.s32.totalorder %s90, %s91
    %p102 = scmp.eq.s32.totalorder %s14, 0
    %p103 = por %p101, %p102
    %p104 = scmp.ne.s32.totalorder %s90, %s91
    %p105 = scmp.eq.s32.totalorder %s15, 5
    %p106 = por %p104, %p105
    %p108 = scmp.ne.s32.totalorder %s91, %s107
    %p109 = scmp.eq.s32.totalorder %s15, 0
    %p110 = por %p108, %p109
    %p111 = scmp.le.s32.totalorder 1, %s9
    %p112 = scmp.lt.s32.totalorder %s9, 7
    %p113 = pnand %p111, %p112
    %p114 = pneg %p113
    // Predicated region
    $region9: #{tpu_custom_call.1} parent=5 // pred_check
      _
    $region10: #{tpu_custom_call.1} parent=5 // pred_check_branch
      %116 = sbr.rel (%p113) target = $region12
    $region11: #{tpu_custom_call.1} parent=5 // pred_region
      %s117 = ssub.s32 %s9, 1
      // Predicated region
      $region13: #{tpu_custom_call.1} parent=11 // pred_check
        %p118 = pneg %p56
      $region14: #{tpu_custom_call.1} parent=11 // pred_check_branch
        %120 = sbr.rel (%p118) target = $region16
      $region15: #{tpu_custom_call.1} parent=11 // pred_region
        _
      $region16: #{tpu_custom_call.1} parent=11 // pred_fallthru
        _
      // Predicated region
      $region17: #{tpu_custom_call.1} parent=11 // pred_check
        %p121 = pneg %p77
      $region18: #{tpu_custom_call.1} parent=11 // pred_check_branch
        %123 = sbr.rel (%p121) target = $region20
      $region19: #{tpu_custom_call.1} parent=11 // pred_region
        _
      $region20: #{tpu_custom_call.1} parent=11 // pred_fallthru
        _
    $region12: #{tpu_custom_call.1} parent=5 // pred_fallthru
      _
    %p124 = scmp.lt.s32.totalorder %s9, 6
    // Predicated region
    $region21: #{tpu_custom_call.1} parent=5 // pred_check
      %p125 = pneg %p124
    $region22: #{tpu_custom_call.1} parent=5 // pred_check_branch
      %127 = sbr.rel (%p125) target = $region24
    $region23: #{tpu_custom_call.1} parent=5 // pred_region
      // Predicated region
      $region25: #{tpu_custom_call.1} parent=23 // pred_check
        %p128 = pneg %p29
      $region26: #{tpu_custom_call.1} parent=23 // pred_check_branch
        %130 = sbr.rel (%p128) target = $region28
      $region27: #{tpu_custom_call.1} parent=23 // pred_region
        %s131 = smul.u32 2, %s9
        %p132 = scmp.lt.s32.totalorder %s131, 11
        %s133 = scalar_select %p132, %s131, 11
        %s134 = smul.addr %s133, 8
        %s135 = scalar_lea.vmem %s0, %s134
        %s136 = smul.u32 2, %s9
      $region28: #{tpu_custom_call.1} parent=23 // pred_fallthru
        _
    $region24: #{tpu_custom_call.1} parent=5 // pred_fallthru
      _
    %p137 = scmp.le.s32.totalorder 1, %s9
    %p138 = scmp.lt.s32.totalorder %s9, 7
    %p139 = pnand %p137, %p138
    %p140 = pneg %p139
    // Predicated region
    $region29: #{tpu_custom_call.1} parent=5 // pred_check
      _
    $region30: #{tpu_custom_call.1} parent=5 // pred_check_branch
      %142 = sbr.rel (%p139) target = $region32
    $region31: #{tpu_custom_call.1} parent=5 // pred_region
      %s143 = ssub.s32 %s9, 1
      %s144 = smul.u32 2, %s14
      %p145 = scmp.lt.s32.totalorder %s144, 11
      %s146 = scalar_select %p145, %s144, 11
      %s147 = smul.addr %s146, 8
      %s148 = scalar_lea.vmem %s0, %s147
      %p149 = pneg %p35
      %p150 = pneg %p32
      %p151 = pneg %p56
      %p152 = pneg %p53
      %p153 = pneg %p77
      %p154 = pneg %p74
      %p155 = pneg %p103
      %p156 = pneg %p100
      %s157 = smul.u32 4, %s14
      %p158 = scmp.lt.s32.totalorder %s157, 23
      %s159 = scalar_select %p158, %s157, 23
      %s160 = smul.addr %s159, 8
      %s161 = scalar_lea.vmem %s3, %s160
      %s162 = smul.u32 2, %s14
      %p163 = scmp.lt.s32.totalorder %s162, 11
      %s164 = scalar_select %p163, %s162, 11
      %s165 = smul.addr %s164, 8
      %s166 = scalar_lea.vmem %s0, %s165
      %s167 = smul.u32 2, %s14
      %s168 = smul.u32 4, %s14
      %p169 = scmp.lt.s32.totalorder %s168, 23
      %s170 = scalar_select %p169, %s168, 23
      %s171 = smul.addr %s170, 8
      %s172 = scalar_lea.vmem %s3, %s171
      %s173 = smul.u32 4, %s14
      %v174 = vld [vmem:[%s166] sm:$0xff]
      %v175 = vld [vmem:[%s166 + $0x8] sm:$0xff]
      %v176 = vld [vmem:[%s2] sm:$0xff]
      %v177 = vld [vmem:[%s2 + $0x8] sm:$0xff]
      %vm178 = vcmask 130048
      %v180 = vsel %vm178, %v174, 0
      %v183 = vsel %vm178, %v175, 0
      %185 = vmatprep.subr.mxu0 0.0
      %186 = vmatpush1.msra.mxu0 0.0
      %187 = vmatprep.subr.mxu0 0.0
      %188 = vmatpush1.msra.mxu0 0.0
      %189 = vmatprep.subr.mxu0 0.0
      %190 = vmatpush1.msra.mxu0 0.0
      %191 = vmatprep.subr.mxu0 0.0
      %192 = vmatpush1.msra.mxu0 0.0
      %193 = vmatprep.subr.mxu0 0.0
      %194 = vmatpush1.msra.mxu0 0.0
      %195 = vmatprep.subr.mxu0 0.0
      %196 = vmatpush1.msra.mxu0 0.0
      %197 = vmatprep.subr.mxu0 0.0
      %198 = vmatpush1.msra.mxu0 0.0
      %199 = vmatprep.subr.mxu0 0.0
      %200 = vmatpush1.msra.mxu0 0.0
      %201 = vmatprep.subr.mxu0 0.0
      %202 = vmatpush1.msra.mxu0 0.0
      %203 = vmatprep.subr.mxu0 0.0
      %204 = vmatpush1.msra.mxu0 0.0
      %205 = vmatprep.subr.mxu0 0.0
      %206 = vmatpush1.msra.mxu0 0.0
      %207 = vmatprep.subr.mxu0 0.0
      %208 = vmatpush1.msra.mxu0 0.0
      %209 = vmatprep.subr.mxu0 0.0
      %210 = vmatpush1.msra.mxu0 0.0
      %211 = vmatprep.subr.mxu0 0.0
      %212 = vmatpush1.msra.mxu0 0.0
      %213 = vmatprep.subr.mxu0 0.0
      %214 = vmatpush1.msra.mxu0 %v177
      %215 = vmatprep.subr.mxu0 0.0
      %216 = vmatpush1.msra.mxu0 %v176
      %217 = vmatprep.subr.mxu0 0.0
      %218 = vmatpush2.msra.mxu0 0.0
      %219 = vmatprep.subr.mxu0 0.0
      %220 = vmatpush2.msra.mxu0 0.0
      %221 = vmatprep.subr.mxu0 0.0
      %222 = vmatpush2.msra.mxu0 0.0
      %223 = vmatprep.subr.mxu0 0.0
      %224 = vmatpush2.msra.mxu0 0.0
      %225 = vmatprep.subr.mxu0 0.0
      %226 = vmatpush2.msra.mxu0 0.0
      %227 = vmatprep.subr.mxu0 0.0
      %228 = vmatpush2.msra.mxu0 0.0
      %229 = vmatprep.subr.mxu0 0.0
      %230 = vmatpush2.msra.mxu0 0.0
      %231 = vmatprep.subr.mxu0 0.0
      %232 = vmatpush2.msra.mxu0 0.0
      %233 = vmatprep.subr.mxu0 0.0
      %234 = vmatpush2.msra.mxu0 0.0
      %235 = vmatprep.subr.mxu0 0.0
      %236 = vmatpush2.msra.mxu0 0.0
      %237 = vmatprep.subr.mxu0 0.0
      %238 = vmatpush2.msra.mxu0 0.0
      %239 = vmatprep.subr.mxu0 0.0
      %240 = vmatpush2.msra.mxu0 0.0
      %241 = vmatprep.subr.mxu0 0.0
      %242 = vmatpush2.msra.mxu0 0.0
      %243 = vmatprep.subr.mxu0 0.0
      %244 = vmatpush2.msra.mxu0 0.0
      %245 = vmatprep.subr.mxu0 0.0
      %246 = vmatpush2.msra.mxu0 0.0
      %247 = vmatprep.subr.mxu0 0.0
      %248 = vmatpush2.msra.mxu0 0.0
      %249 = vmatprep.mubr.f32.mxu0 0.0
      %250 = vmatmul.mubr.f32.gmra.mxu0 %v180
      %v251 = vpop.f32.mrf.mxu0
      %v252 = vadd.f32 0.0, %v251
      %v253 = vpop.f32.mrf.mxu0
      %254 = vmatprep.mubr.f32.mxu0 0.0
      %255 = vmatmul.mubr.f32.gmra.mxu0 %v183
      %v256 = vpop.f32.mrf.mxu0
      %v257 = vadd.f32 0.0, %v256
      %v258 = vpop.f32.mrf.mxu0
      %259 = vdwg.mxu0
      %vm260 = vcmask 261120
      %261 = vst.msk [vmem:[#allocation2] sm:$0xff] %vm260, %v252
      %262 = vst.msk [vmem:[#allocation2 + $0x8] sm:$0xff] %vm260, %v257
      %v263 = vld [vmem:[%s1] sm:$0xff]
      %v264 = vld [vmem:[%s1 + $0x8] sm:$0xff]
      %v265 = vld [vmem:[%s1 + $0x10] sm:$0xff]
      %v266 = vld [vmem:[%s1 + $0x18] sm:$0xff]
      %v267 = vld [vmem:[#allocation2] sm:$0xff]
      %v268 = vld [vmem:[#allocation2 + $0x8] sm:$0xff]
      %v270 = vsel %vm178, %v263, 0
      %v273 = vsel %vm178, %v264, 0
      %v276 = vsel %vm178, %v265, 0
      %v279 = vsel %vm178, %v266, 0
      %281 = vmatprep.subr.mxu0 0.0
      %282 = vmatpush1.msra.mxu0 0.0
      %283 = vmatprep.subr.mxu0 0.0
      %284 = vmatpush1.msra.mxu0 0.0
      %285 = vmatprep.subr.mxu0 0.0
      %286 = vmatpush1.msra.mxu0 0.0
      %287 = vmatprep.subr.mxu0 0.0
      %288 = vmatpush1.msra.mxu0 0.0
      %289 = vmatprep.subr.mxu0 0.0
      %290 = vmatpush1.msra.mxu0 0.0
      %291 = vmatprep.subr.mxu0 0.0
      %292 = vmatpush1.msra.mxu0 0.0
      %293 = vmatprep.subr.mxu0 0.0
      %294 = vmatpush1.msra.mxu0 0.0
      %295 = vmatprep.subr.mxu0 0.0
      %296 = vmatpush1.msra.mxu0 0.0
      %297 = vmatprep.subr.mxu0 0.0
      %298 = vmatpush1.msra.mxu0 0.0
      %299 = vmatprep.subr.mxu0 0.0
      %300 = vmatpush1.msra.mxu0 0.0
      %301 = vmatprep.subr.mxu0 0.0
      %302 = vmatpush1.msra.mxu0 0.0
      %303 = vmatprep.subr.mxu0 0.0
      %304 = vmatpush1.msra.mxu0 0.0
      %305 = vmatprep.subr.mxu0 0.0
      %306 = vmatpush1.msra.mxu0 0.0
      %307 = vmatprep.subr.mxu0 0.0
      %308 = vmatpush1.msra.mxu0 0.0
      %309 = vmatprep.subr.mxu0 0.0
      %310 = vmatpush1.msra.mxu0 %v268
      %311 = vmatprep.subr.mxu0 0.0
      %312 = vmatpush1.msra.mxu0 %v267
      %313 = vmatprep.subr.mxu0 0.0
      %314 = vmatpush2.msra.mxu0 0.0
      %315 = vmatprep.subr.mxu0 0.0
      %316 = vmatpush2.msra.mxu0 0.0
      %317 = vmatprep.subr.mxu0 0.0
      %318 = vmatpush2.msra.mxu0 0.0
      %319 = vmatprep.subr.mxu0 0.0
      %320 = vmatpush2.msra.mxu0 0.0
      %321 = vmatprep.subr.mxu0 0.0
      %322 = vmatpush2.msra.mxu0 0.0
      %323 = vmatprep.subr.mxu0 0.0
      %324 = vmatpush2.msra.mxu0 0.0
      %325 = vmatprep.subr.mxu0 0.0
      %326 = vmatpush2.msra.mxu0 0.0
      %327 = vmatprep.subr.mxu0 0.0
      %328 = vmatpush2.msra.mxu0 0.0
      %329 = vmatprep.subr.mxu0 0.0
      %330 = vmatpush2.msra.mxu0 0.0
      %331 = vmatprep.subr.mxu0 0.0
      %332 = vmatpush2.msra.mxu0 0.0
      %333 = vmatprep.subr.mxu0 0.0
      %334 = vmatpush2.msra.mxu0 0.0
      %335 = vmatprep.subr.mxu0 0.0
      %336 = vmatpush2.msra.mxu0 0.0
      %337 = vmatprep.subr.mxu0 0.0
      %338 = vmatpush2.msra.mxu0 0.0
      %339 = vmatprep.subr.mxu0 0.0
      %340 = vmatpush2.msra.mxu0 0.0
      %341 = vmatprep.subr.mxu0 0.0
      %342 = vmatpush2.msra.mxu0 0.0
      %343 = vmatprep.subr.mxu0 0.0
      %344 = vmatpush2.msra.mxu0 0.0
      %345 = vmatprep.mubr.f32.mxu0 0.0
      %346 = vmatmul.mubr.f32.gmra.mxu0 %v270
      %v347 = vpop.f32.mrf.mxu0
      %v348 = vadd.f32 0.0, %v347
      %v349 = vpop.f32.mrf.mxu0
      %350 = vmatprep.mubr.f32.mxu0 0.0
      %351 = vmatmul.mubr.f32.gmra.mxu0 %v273
      %v352 = vpop.f32.mrf.mxu0
      %v353 = vadd.f32 0.0, %v352
      %v354 = vpop.f32.mrf.mxu0
      %355 = vmatprep.mubr.f32.mxu0 0.0
      %356 = vmatmul.mubr.f32.gmra.mxu0 %v276
      %v357 = vpop.f32.mrf.mxu0
      %v358 = vadd.f32 0.0, %v357
      %v359 = vpop.f32.mrf.mxu0
      %360 = vmatprep.mubr.f32.mxu0 0.0
      %361 = vmatmul.mubr.f32.gmra.mxu0 %v279
      %v362 = vpop.f32.mrf.mxu0
      %v363 = vadd.f32 0.0, %v362
      %v364 = vpop.f32.mrf.mxu0
      %365 = vdwg.mxu0
      %366 = vst.msk [vmem:[%s172] sm:$0xff] %vm260, %v348
      %367 = vst.msk [vmem:[%s172 + $0x8] sm:$0xff] %vm260, %v353
      %368 = vst.msk [vmem:[%s172 + $0x10] sm:$0xff] %vm260, %v358
      %369 = vst.msk [vmem:[%s172 + $0x18] sm:$0xff] %vm260, %v363
      %s370 = smul.u32 4, %s14
      %p371 = scmp.lt.s32.totalorder %s370, 23
      %s372 = scalar_select %p371, %s370, 23
      %s373 = smul.addr %s372, 8
      %s374 = scalar_lea.vmem %s3, %s373
      // Predicated region
      $region33: #{tpu_custom_call.1} parent=31 // pred_check
        %p375 = pneg %p100
      $region34: #{tpu_custom_call.1} parent=31 // pred_check_branch
        %377 = sbr.rel (%p375) target = $region36
      $region35: #{tpu_custom_call.1} parent=31 // pred_region
        %s378 = smul.u32 4, %s14
      $region36: #{tpu_custom_call.1} parent=31 // pred_fallthru
        _
    $region32: #{tpu_custom_call.1} parent=5 // pred_fallthru
      _
    %p379 = scmp.le.s32.totalorder 2, %s9
    // Predicated region
    $region37: #{tpu_custom_call.1} parent=5 // pred_check
      %p380 = pneg %p379
    $region38: #{tpu_custom_call.1} parent=5 // pred_check_branch
      %382 = sbr.rel (%p380) target = $region40
    $region39: #{tpu_custom_call.1} parent=5 // pred_region
      %s383 = ssub.s32 %s9, 2
      // Predicated region
      $region41: #{tpu_custom_call.1} parent=39 // pred_check
        %p384 = pneg %p106
      $region42: #{tpu_custom_call.1} parent=39 // pred_check_branch
        %386 = sbr.rel (%p384) target = $region44
      $region43: #{tpu_custom_call.1} parent=39 // pred_region
        %s387 = smul.u32 4, %s15
        %p388 = scmp.lt.s32.totalorder %s387, 23
        %s389 = scalar_select %p388, %s387, 23
        %s390 = smul.addr %s389, 8
        %s391 = scalar_lea.vmem %s3, %s390
      $region44: #{tpu_custom_call.1} parent=39 // pred_fallthru
        _
    $region40: #{tpu_custom_call.1} parent=5 // pred_fallthru
      _
  $region6: #{tpu_custom_call.1} parent=0 // loop_footer
    %s13 = sadd.s32 1, %s9
  $region7: #{tpu_custom_call.1} parent=0 // loop_footer_branch
    %8 = sbr.rel target = $region3
  $region8: #{tpu_custom_call.1} parent=0 // loop_exit
    _

</llo_original>
